<compile_context>
chip_gen: v7x
topology: tpu7x:2x2x1
jax: 0.10.0
libtpu: 0.0.40
codegen_flags: <defaults>
</compile_context>

<pallas_src>
import functools

import jax
import jax.numpy as jnp
from jax.experimental import pallas as pl
from jax.experimental.pallas import tpu as pltpu


def _round_up(x, m):
    return -(-x // m) * m


def _vq_kernel(z_ref, emb_ref, esq_ref, zq_ref, idx_ref):
    # z_ref:   (D, TN)    lane-dense tile of encoder outputs (f32)
    # emb_ref: (n_e, D)   full codebook (f32)
    # esq_ref: (n_e, 1)   precomputed ||e_j||^2 column (f32)
    # zq_ref:  (D, TN)    quantized outputs (lane-dense)
    # idx_ref: (1, TN)    argmin codebook indices (int32), lane-dense row
    z = z_ref[...]                                                   # (D, TN)
    emb = emb_ref[...]                                               # (n_e, D)
    e_sq = esq_ref[...]                                              # (n_e, 1)
    n_e = emb.shape[0]

    # score[j, n] = ||e_j||^2 - 2 e_j . z_n  (same argmin_j as the full
    # squared distance; ||z_n||^2 is constant along j and is dropped).
    # MXU matmul contracting D; no transpose of either operand needed.
    cross = jax.lax.dot_general(
        emb, z,
        dimension_numbers=(((1,), (0,)), ((), ())),
        preferred_element_type=jnp.float32,
    )                                                                # (n_e, TN)
    score = e_sq - 2.0 * cross                                       # (n_e, TN)

    # argmin over the codebook (sublane) axis, first-occurrence tie-break.
    s_min = jnp.min(score, axis=0, keepdims=True)                    # (1, TN)
    code_iota = jax.lax.broadcasted_iota(jnp.int32, (n_e, 1), 0)     # (n_e, 1)
    big = jnp.iinfo(jnp.int32).max
    idx = jnp.min(jnp.where(score == s_min, code_iota, big), axis=0)  # (TN,)

    # gather selected codebook rows via a one-hot matmul (stays in VMEM).
    onehot = (code_iota == idx[None, :]).astype(jnp.float32)         # (n_e, TN)
    zq = jax.lax.dot_general(
        emb, onehot,
        dimension_numbers=(((0,), (0,)), ((), ())),
        preferred_element_type=jnp.float32,
    )                                                                # (D, TN)

    zq_ref[...] = zq.astype(zq_ref.dtype)
    idx_ref[...] = idx[None, :].astype(jnp.int32)                    # (1, TN)


@functools.partial(jax.jit, static_argnames=("beta", "tile_n"))
def vector_quantizer_forward(z, embedding, *, beta=0.25, tile_n=2048):
    """Forward pass of VectorQuantizer.

    z:         (B, C, H, W)  float32  (C == e_dim)
    embedding: (n_e, e_dim)  float32  codebook
    Returns (z_q, loss, (perplexity, min_encodings, min_encoding_indices))
    matching the PyTorch module's forward semantics.
    """
    B, C, H, W = z.shape
    D = C
    n_e = embedding.shape[0]
    N = B * H * W

    # glue: NCHW -> (C, B*H*W) lane-dense slab (one transpose pass, same as the
    # reference's NCHW->NHWC permute).  Column n corresponds to flattened row n
    # of the NHWC view.
    z_cm = jnp.transpose(z, (1, 0, 2, 3)).reshape(D, N).astype(jnp.float32)

    # tile selection: lane dim a multiple of 128; keep >= 2 grid steps when N
    # allows it so the "parallel" axis can shard across v7x's two TensorCores.
    half = _round_up(-(-N // 2), 128)
    tn = max(128, min(tile_n, half))
    num_tiles = pl.cdiv(N, tn)        # ragged last tile handled by Pallas masking

    emb_f32 = embedding.astype(jnp.float32)
    e_sq = jnp.sum(emb_f32 * emb_f32, axis=1, keepdims=True)          # (n_e, 1)

    zq_cm, idx_rows = pl.pallas_call(
        _vq_kernel,
        out_shape=(
            jax.ShapeDtypeStruct((D, N), z.dtype),
            jax.ShapeDtypeStruct((1, num_tiles * tn), jnp.int32),
        ),
        grid_spec=pltpu.PrefetchScalarGridSpec(
            num_scalar_prefetch=0,
            grid=(num_tiles,),
            in_specs=[
                pl.BlockSpec((D, tn), lambda i: (0, i)),      # z column tile
                pl.BlockSpec((n_e, D), lambda i: (0, 0)),     # full codebook
                pl.BlockSpec((n_e, 1), lambda i: (0, 0)),     # ||e||^2 column
            ],
            out_specs=[
                pl.BlockSpec((D, tn), lambda i: (0, i)),      # z_q column tile
                pl.BlockSpec((1, tn), lambda i: (0, i)),      # lane-dense idx
            ],
        ),
        compiler_params=pltpu.CompilerParams(dimension_semantics=("parallel",)),
    )(z_cm, emb_f32, e_sq)

    zq_cm = zq_cm.astype(jnp.float32)
    min_idx = idx_rows[0, :N]                                         # (N,)

    # loss = ||sg[z_q] - z||^2 + beta * ||z_q - sg[z]||^2  (PyTorch sg placement)
    # TODO(synk): differentiating through pallas_call for codebook updates needs
    # a custom_vjp; forward values match the PyTorch module exactly.
    loss = (jnp.mean((jax.lax.stop_gradient(zq_cm) - z_cm) ** 2)
            + beta * jnp.mean((zq_cm - jax.lax.stop_gradient(z_cm)) ** 2))

    # straight-through estimator
    zq_st = z_cm + jax.lax.stop_gradient(zq_cm - z_cm)

    # perplexity from a bincount over the compact indices (no (N, n_e) one-hot
    # on the hot path).
    counts = jnp.zeros((n_e,), jnp.float32).at[min_idx].add(1.0)
    e_mean = counts / N
    perplexity = jnp.exp(-jnp.sum(e_mean * jnp.log(e_mean + 1e-10)))

    # min_encodings kept for API parity with the module; XLA drops it if the
    # caller doesn't consume it.
    min_enc = jax.nn.one_hot(min_idx, n_e, dtype=z.dtype)             # (N, n_e)

    # glue: (D, N) -> (C, B, H, W) -> NCHW
    z_q = jnp.transpose(zq_st.reshape(D, B, H, W), (1, 0, 2, 3)).astype(z.dtype)
    return z_q, loss, (perplexity, min_enc, min_idx[:, None])


if __name__ == "__main__":
    # module config
    n_e = 128     # number of embeddings
    e_dim = 16    # embedding dim (== channel dim of z)
    beta = 0.25

    # deterministic parameter init: uniform(-1/n_e, 1/n_e), as in the module
    key = jax.random.PRNGKey(0)
    k_emb, k_z = jax.random.split(key)
    embedding = jax.random.uniform(
        k_emb, (n_e, e_dim), minval=-1.0 / n_e, maxval=1.0 / n_e, dtype=jnp.float32
    )

    # example encoder output: (B, C, H, W) -> N = B*H*W = 512 rows
    B, H, W = 2, 16, 16
    z = jax.random.normal(k_z, (B, e_dim, H, W), dtype=jnp.float32)

    z_q, loss, (perplexity, min_encodings, min_encoding_indices) = (
        vector_quantizer_forward(z, embedding, beta=beta)
    )
    jax.block_until_ready((z_q, loss, perplexity, min_encodings, min_encoding_indices))

    assert z_q.shape == z.shape
    assert min_encodings.shape == (B * H * W, n_e)
    assert min_encoding_indices.shape == (B * H * W, 1)

    # cross-check against a pure-JAX reference (PyTorch formula)
    z_flat_ref = jnp.transpose(z, (0, 2, 3, 1)).reshape(-1, e_dim)
    d_ref = (jnp.sum(z_flat_ref ** 2, axis=1, keepdims=True)
             + jnp.sum(embedding ** 2, axis=1)
             - 2.0 * z_flat_ref @ embedding.T)
    idx_ref = jnp.argmin(d_ref, axis=1)
    assert bool(jnp.all(idx_ref == min_encoding_indices[:, 0]))
    zq_ref = embedding[idx_ref]
    zq_ker = jnp.transpose(z_q, (0, 2, 3, 1)).reshape(-1, e_dim)
    assert bool(jnp.allclose(zq_ker, zq_ref, atol=1e-5))

    loss_ref = (jnp.mean((zq_ref - z_flat_ref) ** 2)
                + beta * jnp.mean((zq_ref - z_flat_ref) ** 2))
    assert bool(jnp.allclose(loss, loss_ref, atol=1e-5))

    print("KERNEL_OK")
</pallas_src>

<mosaic_0001>
module attributes {stable_mosaic.version = 11 : i64} {
  func.func private @main(%arg0: i32) attributes {dimension_semantics = [#tpu.dimension_semantics<core_parallel>], iteration_bounds = array<i64: 2>, tpu.core_type = #tpu.core_type<sc_scalar_subcore>, window_params = []} {
    return
  }
}

module attributes {stable_mosaic.version = 11 : i64} {
  func.func private @main(%arg0: i32) attributes {dimension_semantics = [#tpu.dimension_semantics<core_parallel>], iteration_bounds = array<i64: 2>, tpu.core_type = #tpu.core_type<sc_scalar_subcore>, window_params = []} {
    return
  }
}

module attributes {stable_mosaic.version = 11 : i64} {
  func.func @_vq_kernel(%arg0: i32, %arg1: memref<16x256xf32, #tpu.memory_space<vmem>>, %arg2: memref<128x16xf32, #tpu.memory_space<vmem>>, %arg3: memref<128x1xf32, #tpu.memory_space<vmem>>, %arg4: memref<16x256xf32, #tpu.memory_space<vmem>>, %arg5: memref<1x256xi32, #tpu.memory_space<vmem>>) attributes {dimension_semantics = [#tpu.dimension_semantics<parallel>], iteration_bounds = array<i64: 2>, scalar_prefetch = 0 : i64, scratch_operands = 0 : i64, tpu.core_type = #tpu.core_type<tc>, window_params = [{transform_indices = @transform_0, window_bounds = array<i64: 16, 256>}, {pipeline_mode = #tpu.pipeline_mode<synchronous>, transform_indices = @transform_1, window_bounds = array<i64: 128, 16>}, {pipeline_mode = #tpu.pipeline_mode<synchronous>, transform_indices = @transform_2, window_bounds = array<i64: 128, 1>}, {transform_indices = @transform_3, window_bounds = array<i64: 16, 256>}, {transform_indices = @transform_4, window_bounds = array<i64: 1, 256>}]} {
    %c0 = arith.constant 0 : index
    %c0_0 = arith.constant 0 : index
    %0 = vector.load %arg1[%c0, %c0_0] : memref<16x256xf32, #tpu.memory_space<vmem>>, vector<16x256xf32>
    %c0_1 = arith.constant 0 : index
    %c0_2 = arith.constant 0 : index
    %1 = vector.load %arg2[%c0_1, %c0_2] : memref<128x16xf32, #tpu.memory_space<vmem>>, vector<128x16xf32>
    %c0_3 = arith.constant 0 : index
    %c0_4 = arith.constant 0 : index
    %2 = vector.load %arg3[%c0_3, %c0_4] : memref<128x1xf32, #tpu.memory_space<vmem>>, vector<128x1xf32>
    %cst = arith.constant dense<0.000000e+00> : vector<128x256xf32>
    %3 = tpu.matmul %1, %0, %cst {dimension_numbers = #tpu.dot_dimension_numbers<[1], [0], [0], [1], [0, 0, 1, 1], [], []>} : vector<128x16xf32>, vector<16x256xf32>, vector<128x256xf32> -> vector<128x256xf32>
    %cst_5 = arith.constant 2.000000e+00 : f32
    %4 = vector.broadcast %cst_5 : f32 to vector<128x256xf32>
    %5 = arith.mulf %4, %3 : vector<128x256xf32>
    %6 = vector.broadcast %2 : vector<128x1xf32> to vector<128x256xf32>
    %7 = arith.subf %6, %5 : vector<128x256xf32>
    %cst_6 = arith.constant dense<0x7F800000> : vector<256xf32>
    %8 = vector.multi_reduction <minimumf>, %7, %cst_6 [0] : vector<128x256xf32> to vector<256xf32>
    %9 = vector.shape_cast %8 : vector<256xf32> to vector<1x256xf32>
    %10 = tpu.iota {dimensions = array<i32: 0>} : vector<128x1xi32>
    %11 = vector.broadcast %9 : vector<1x256xf32> to vector<128x256xf32>
    %12 = arith.cmpf oeq, %7, %11 : vector<128x256xf32>
    %c2147483647_i32 = arith.constant 2147483647 : i32
    %13 = vector.shape_cast %10 : vector<128x1xi32> to vector<128x1xi32>
    %14 = vector.broadcast %13 : vector<128x1xi32> to vector<128x256xi32>
    %15 = vector.broadcast %c2147483647_i32 : i32 to vector<128x256xi32>
    %16 = arith.select %12, %14, %15 : vector<128x256xi1>, vector<128x256xi32>
    %cst_7 = arith.constant dense<2147483647> : vector<256xi32>
    %17 = vector.multi_reduction <minsi>, %16, %cst_7 [0] : vector<128x256xi32> to vector<256xi32>
    %18 = vector.shape_cast %17 : vector<256xi32> to vector<1x256xi32>
    %19 = vector.broadcast %10 : vector<128x1xi32> to vector<128x256xi32>
    %20 = vector.broadcast %18 : vector<1x256xi32> to vector<128x256xi32>
    %21 = arith.cmpi eq, %19, %20 : vector<128x256xi32>
    %22 = arith.extui %21 : vector<128x256xi1> to vector<128x256xi32>
    %23 = arith.sitofp %22 : vector<128x256xi32> to vector<128x256xf32>
    %cst_8 = arith.constant dense<0.000000e+00> : vector<16x256xf32>
    %24 = tpu.matmul %1, %23, %cst_8 {dimension_numbers = #tpu.dot_dimension_numbers<[0], [0], [1], [1], [0, 1, 1, 1], [], []>} : vector<128x16xf32>, vector<128x256xf32>, vector<16x256xf32> -> vector<16x256xf32>
    %c0_9 = arith.constant 0 : index
    %c0_10 = arith.constant 0 : index
    %25 = vector.load %arg4[%c0_9, %c0_10] : memref<16x256xf32, #tpu.memory_space<vmem>>, vector<16x256xf32>
    tpu.vector_store %arg4[%c0_9, %c0_10], %24 {strides = array<i32>} : memref<16x256xf32, #tpu.memory_space<vmem>>, vector<16x256xf32>,
    %26 = vector.shape_cast %17 : vector<256xi32> to vector<1x256xi32>
    %c0_11 = arith.constant 0 : index
    %c0_12 = arith.constant 0 : index
    %27 = vector.load %arg5[%c0_11, %c0_12] : memref<1x256xi32, #tpu.memory_space<vmem>>, vector<1x256xi32>
    tpu.vector_store %arg5[%c0_11, %c0_12], %26 {strides = array<i32>} : memref<1x256xi32, #tpu.memory_space<vmem>>, vector<1x256xi32>,
    return
  }
  func.func @transform_0(%arg0: i32) -> (i32, i32) {
    %c0_i32 = arith.constant 0 : i32
    %c0_i32_0 = arith.constant 0 : i32
    return %c0_i32, %arg0 : i32, i32
  }
  func.func @transform_1(%arg0: i32) -> (i32, i32) {
    %c0_i32 = arith.constant 0 : i32
    %c0_i32_0 = arith.constant 0 : i32
    %c0_i32_1 = arith.constant 0 : i32
    return %c0_i32, %c0_i32_0 : i32, i32
  }
  func.func @transform_2(%arg0: i32) -> (i32, i32) {
    %c0_i32 = arith.constant 0 : i32
    %c0_i32_0 = arith.constant 0 : i32
    %c0_i32_1 = arith.constant 0 : i32
    return %c0_i32, %c0_i32_0 : i32, i32
  }
  func.func @transform_3(%arg0: i32) -> (i32, i32) {
    %c0_i32 = arith.constant 0 : i32
    %c0_i32_0 = arith.constant 0 : i32
    return %c0_i32, %arg0 : i32, i32
  }
  func.func @transform_4(%arg0: i32) -> (i32, i32) {
    %c0_i32 = arith.constant 0 : i32
    %c0_i32_0 = arith.constant 0 : i32
    return %c0_i32, %arg0 : i32, i32
  }
}

</mosaic_0001>

<llo_original>
// kernel: vector_quantizer_forward.1
$region0: #{vector_quantizer_forward.1}
  #allocation0 [shape = 'u32[]', space=smem, size = 0x4, offset = 0x4, fixed_abs, tag = 'smem constant byte address 0x4 - core index']
  #allocation1 [shape = 'u32[144,128]{1,0:T(1,128)}', space=vmem, size = 0x12000, scoped, tag = 'internal scratch']
  %s0 = inlined_call_operand.vmem [shape: f32[16,512], index: 0, kind: input, shape index: {}]
  %s1 = inlined_call_operand.vmem [shape: f32[128,16], index: 1, kind: input, shape index: {}]
  %s2 = inlined_call_operand.vmem [shape: f32[128,1], index: 2, kind: input, shape index: {}]
  %s3 = inlined_call_operand.vmem [shape: f32[16,512], index: 3, kind: output, shape index: {0}]
  %s4 = inlined_call_operand.vmem [shape: s32[1,512], index: 4, kind: output, shape index: {1}]
  %5 = xla_tuple %s3, %s4
  %s6 = sld [smem:[#allocation0]]
  $region95: #{vector_quantizer_forward.1} parent=0
    _
  %s8 = ssub.s32 1, %s6
  %s9 = scalar_select 0, %s8, %s6
  $region1: #{vector_quantizer_forward.1} parent=0
    #allocation2 [shape = 'u8[32768]{0}', space=vmem, size = 0x8000, scoped, tag = 'input window, operand 0']
    #allocation3 [shape = 'u8[32768]{0}', space=vmem, size = 0x8000, scoped, tag = 'output window, operand 0']
    loop: start=0, step=1, limit=4
    $region2: #{vector_quantizer_forward.1} parent=1 // loop_pre_header
      _
    $region3: #{vector_quantizer_forward.1} parent=1 // loop_header
      %s11 = sphi 0, %s15
      %p12 = scmp.ge.s32.totalorder %s11, 4
      %s21 = sphi 0, %s23
      %s24 = sphi 0, %s21
      %s25 = sphi 0, %s24
      %s41 = sphi 0, %s25
      %s45 = sphi 0, %s45
      %s47 = sphi 0, %s45
      %s48 = sphi 0, %s47
      %s62 = sphi 0, %s48
      %s66 = sphi 0, %s66
      %s68 = sphi 0, %s66
      %s69 = sphi 0, %s68
      %s83 = sphi 0, %s69
      %s89 = sphi 0, %s91
      %s92 = sphi 0, %s89
      %s93 = sphi 0, %s92
      %s109 = sphi 0, %s93
      %s115 = sphi 0, %s117
      %s118 = sphi 0, %s115
      %s119 = sphi 0, %s118
      %s135 = sphi 0, %s119
    $region4: #{vector_quantizer_forward.1} parent=1 // loop_header_branch
      %14 = sbr.rel (%p12) target = $region8
    $region5: #{vector_quantizer_forward.1} parent=1 // loop_body
      %s16 = ssub.s32 %s11, 1
      %s17 = ssub.s32 %s11, 2
      %s18 = sadd.s32 %s11, 1
      %s19 = ssub.s32 %s11, %s18
      %p20 = scmp.eq.s32.totalorder %s19, 0
      %s22 = sadd.s32 %s21, 1
      %s23 = scalar_select %p20, %s21, %s22
      %p26 = pneg %p20
      %p27 = scmp.eq.s32.totalorder %s11, 1
      %p28 = por %p26, %p27
      %p29 = scmp.ne.s32.totalorder %s21, %s24
      %p30 = scmp.eq.s32.totalorder %s11, 0
      %p31 = por %p29, %p30
      %p32 = scmp.ne.s32.totalorder %s21, %s24
      %p33 = scmp.eq.s32.totalorder %s16, 1
      %p34 = por %p32, %p33
      %p35 = scmp.ne.s32.totalorder %s24, %s25
      %p36 = scmp.eq.s32.totalorder %s16, 0
      %p37 = por %p35, %p36
      %p38 = scmp.ne.s32.totalorder %s24, %s25
      %p39 = scmp.eq.s32.totalorder %s17, 1
      %p40 = por %p38, %p39
      %p42 = scmp.ne.s32.totalorder %s25, %s41
      %p43 = scmp.eq.s32.totalorder %s17, 0
      %p44 = por %p42, %p43
      %s46 = sadd.s32 %s45, 1
      %p49 = scmp.eq.s32.totalorder %s11, 1
      %p50 = scmp.ne.s32.totalorder %s45, %s47
      %p51 = scmp.eq.s32.totalorder %s11, 0
      %p52 = por %p50, %p51
      %p53 = scmp.ne.s32.totalorder %s45, %s47
      %p54 = scmp.eq.s32.totalorder %s16, 1
      %p55 = por %p53, %p54
      %p56 = scmp.ne.s32.totalorder %s47, %s48
      %p57 = scmp.eq.s32.totalorder %s16, 0
      %p58 = por %p56, %p57
      %p59 = scmp.ne.s32.totalorder %s47, %s48
      %p60 = scmp.eq.s32.totalorder %s17, 1
      %p61 = por %p59, %p60
      %p63 = scmp.ne.s32.totalorder %s48, %s62
      %p64 = scmp.eq.s32.totalorder %s17, 0
      %p65 = por %p63, %p64
      %s67 = sadd.s32 %s66, 1
      %p70 = scmp.eq.s32.totalorder %s11, 1
      %p71 = scmp.ne.s32.totalorder %s66, %s68
      %p72 = scmp.eq.s32.totalorder %s11, 0
      %p73 = por %p71, %p72
      %p74 = scmp.ne.s32.totalorder %s66, %s68
      %p75 = scmp.eq.s32.totalorder %s16, 1
      %p76 = por %p74, %p75
      %p77 = scmp.ne.s32.totalorder %s68, %s69
      %p78 = scmp.eq.s32.totalorder %s16, 0
      %p79 = por %p77, %p78
      %p80 = scmp.ne.s32.totalorder %s68, %s69
      %p81 = scmp.eq.s32.totalorder %s17, 1
      %p82 = por %p80, %p81
      %p84 = scmp.ne.s32.totalorder %s69, %s83
      %p85 = scmp.eq.s32.totalorder %s17, 0
      %p86 = por %p84, %p85
      %s87 = ssub.s32 %s11, %s18
      %p88 = scmp.eq.s32.totalorder %s87, 0
      %s90 = sadd.s32 %s89, 1
      %s91 = scalar_select %p88, %s89, %s90
      %p94 = pneg %p88
      %p95 = scmp.eq.s32.totalorder %s11, 1
      %p96 = por %p94, %p95
      %p97 = scmp.ne.s32.totalorder %s89, %s92
      %p98 = scmp.eq.s32.totalorder %s11, 0
      %p99 = por %p97, %p98
      %p100 = scmp.ne.s32.totalorder %s89, %s92
      %p101 = scmp.eq.s32.totalorder %s16, 1
      %p102 = por %p100, %p101
      %p103 = scmp.ne.s32.totalorder %s92, %s93
      %p104 = scmp.eq.s32.totalorder %s16, 0
      %p105 = por %p103, %p104
      %p106 = scmp.ne.s32.totalorder %s92, %s93
      %p107 = scmp.eq.s32.totalorder %s17, 1
      %p108 = por %p106, %p107
      %p110 = scmp.ne.s32.totalorder %s93, %s109
      %p111 = scmp.eq.s32.totalorder %s17, 0
      %p112 = por %p110, %p111
      %s113 = ssub.s32 %s11, %s18
      %p114 = scmp.eq.s32.totalorder %s113, 0
      %s116 = sadd.s32 %s115, 1
      %s117 = scalar_select %p114, %s115, %s116
      %p120 = pneg %p114
      %p121 = scmp.eq.s32.totalorder %s11, 1
      %p122 = por %p120, %p121
      %p123 = scmp.ne.s32.totalorder %s115, %s118
      %p124 = scmp.eq.s32.totalorder %s11, 0
      %p125 = por %p123, %p124
      %p126 = scmp.ne.s32.totalorder %s115, %s118
      %p127 = scmp.eq.s32.totalorder %s16, 1
      %p128 = por %p126, %p127
      %p129 = scmp.ne.s32.totalorder %s118, %s119
      %p130 = scmp.eq.s32.totalorder %s16, 0
      %p131 = por %p129, %p130
      %p132 = scmp.ne.s32.totalorder %s118, %s119
      %p133 = scmp.eq.s32.totalorder %s17, 1
      %p134 = por %p132, %p133
      %p136 = scmp.ne.s32.totalorder %s119, %s135
      %p137 = scmp.eq.s32.totalorder %s17, 0
      %p138 = por %p136, %p137
      %p139 = scmp.le.s32.totalorder 1, %s11
      %p140 = scmp.lt.s32.totalorder %s11, 3
      %p141 = pnand %p139, %p140
      %p142 = pneg %p141
      // Predicated region
      $region9: #{vector_quantizer_forward.1} parent=5 // pred_check
        _
      $region10: #{vector_quantizer_forward.1} parent=5 // pred_check_branch
        %144 = sbr.rel (%p141) target = $region12
      $region11: #{vector_quantizer_forward.1} parent=5 // pred_region
        %s145 = ssub.s32 %s11, 1
        // Predicated region
        $region13: #{vector_quantizer_forward.1} parent=11 // pred_check
          %p146 = pneg %p58
        $region14: #{vector_quantizer_forward.1} parent=11 // pred_check_branch
          %148 = sbr.rel (%p146) target = $region16
        $region15: #{vector_quantizer_forward.1} parent=11 // pred_region
          _
        $region16: #{vector_quantizer_forward.1} parent=11 // pred_fallthru
          _
        // Predicated region
        $region17: #{vector_quantizer_forward.1} parent=11 // pred_check
          %p149 = pneg %p79
        $region18: #{vector_quantizer_forward.1} parent=11 // pred_check_branch
          %151 = sbr.rel (%p149) target = $region20
        $region19: #{vector_quantizer_forward.1} parent=11 // pred_region
          _
        $region20: #{vector_quantizer_forward.1} parent=11 // pred_fallthru
          _
      $region12: #{vector_quantizer_forward.1} parent=5 // pred_fallthru
        _
      %p152 = scmp.lt.s32.totalorder %s11, 2
      // Predicated region
      $region21: #{vector_quantizer_forward.1} parent=5 // pred_check
        %p153 = pneg %p152
      $region22: #{vector_quantizer_forward.1} parent=5 // pred_check_branch
        %155 = sbr.rel (%p153) target = $region24
      $region23: #{vector_quantizer_forward.1} parent=5 // pred_region
        // Predicated region
        $region25: #{vector_quantizer_forward.1} parent=23 // pred_check
          %p156 = pneg %p31
        $region26: #{vector_quantizer_forward.1} parent=23 // pred_check_branch
          %158 = sbr.rel (%p156) target = $region28
        $region27: #{vector_quantizer_forward.1} parent=23 // pred_region
          %s159 = sand.u32 %s21, 1
          %s160 = sand.u32 %s21, 1
          %s161 = smul.addr %s160, 32
          %s162 = scalar_lea.vmem [#allocation2], %s161
          %s163 = smul.u32 2, %s11
          %s164 = smul.addr %s163, 8
          %s165 = scalar_lea.vmem %s0, %s164
          // Predicated region
          $region29: #{vector_quantizer_forward.1} parent=27 // pred_check
            _
          $region30: #{vector_quantizer_forward.1} parent=27 // pred_check_branch
            %167 = sbr.rel (0) target = $region32
          $region31: #{vector_quantizer_forward.1} parent=27 // pred_region
            // Predicated region
            $region33: #{vector_quantizer_forward.1} parent=31 // pred_check
              _
            $region34: #{vector_quantizer_forward.1} parent=31 // pred_check_branch
              %169 = sbr.rel (0) target = $region36
            $region35: #{vector_quantizer_forward.1} parent=31 // pred_region
              loop: start=0, step=1, limit=1
              $region37: #{vector_quantizer_forward.1} parent=35 // loop_pre_header
                _
              $region38: #{vector_quantizer_forward.1} parent=35 // loop_header
                %s171 = sphi 0, %s175
                %p172 = scmp.ge.s32.totalorder %s171, 1
                %s176 = sphi %s165, %s165
                %s177 = sphi %s162, %s162
              $region39: #{vector_quantizer_forward.1} parent=35 // loop_header_branch
                %174 = sbr.rel (%p172) target = $region43
              $region40: #{vector_quantizer_forward.1} parent=35 // loop_body
                %v178 = vld [vmem:[%s176] sm:$0xff]
                %179 = vst [vmem:[%s177] sm:$0xff] %v178
                %v180 = vld [vmem:[%s176 + $0x8] sm:$0xff]
                %181 = vst [vmem:[%s177 + $0x8] sm:$0xff] %v180
                %v182 = vld [vmem:[%s176 + $0x20] sm:$0xff]
                %183 = vst [vmem:[%s177 + $0x10] sm:$0xff] %v182
                %v184 = vld [vmem:[%s176 + $0x28] sm:$0xff]
                %185 = vst [vmem:[%s177 + $0x18] sm:$0xff] %v184
              $region41: #{vector_quantizer_forward.1} parent=35 // loop_footer
                %s175 = sadd.s32 1, %s171
              $region42: #{vector_quantizer_forward.1} parent=35 // loop_footer_branch
                %170 = sbr.rel target = $region38
              $region43: #{vector_quantizer_forward.1} parent=35 // loop_exit
                _
            $region36: #{vector_quantizer_forward.1} parent=31 // pred_fallthru
              _
            // Predicated region
            $region44: #{vector_quantizer_forward.1} parent=31 // pred_check
              _
            $region45: #{vector_quantizer_forward.1} parent=31 // pred_check_branch
              %187 = sbr.rel target = $region47
            $region46: #{vector_quantizer_forward.1} parent=31 // pred_region
              _
            $region47: #{vector_quantizer_forward.1} parent=31 // pred_fallthru
              _
          $region32: #{vector_quantizer_forward.1} parent=27 // pred_fallthru
            _
          %188 = vnop
        $region28: #{vector_quantizer_forward.1} parent=23 // pred_fallthru
          _
      $region24: #{vector_quantizer_forward.1} parent=5 // pred_fallthru
        _
      %p189 = scmp.le.s32.totalorder 1, %s11
      %p190 = scmp.lt.s32.totalorder %s11, 3
      %p191 = pnand %p189, %p190
      %p192 = pneg %p191
      // Predicated region
      $region48: #{vector_quantizer_forward.1} parent=5 // pred_check
        _
      $region49: #{vector_quantizer_forward.1} parent=5 // pred_check_branch
        %194 = sbr.rel (%p191) target = $region51
      $region50: #{vector_quantizer_forward.1} parent=5 // pred_region
        %s195 = ssub.s32 %s11, 1
        %s196 = sand.u32 %s24, 1
        %s197 = sand.u32 %s24, 1
        %s198 = smul.addr %s197, 32
        %s199 = scalar_lea.vmem [#allocation2], %s198
        // Predicated region
        $region52: #{vector_quantizer_forward.1} parent=50 // pred_check
          %p200 = pneg %p37
        $region53: #{vector_quantizer_forward.1} parent=50 // pred_check_branch
          %202 = sbr.rel (%p200) target = $region55
        $region54: #{vector_quantizer_forward.1} parent=50 // pred_region
          _
        $region55: #{vector_quantizer_forward.1} parent=50 // pred_fallthru
          _
        %s203 = sand.u32 %s24, 1
        %s204 = sand.u32 %s24, 1
        %s205 = smul.addr %s204, 32
        %s206 = scalar_lea.vmem [#allocation2], %s205
        %p207 = pneg %p37
        %p208 = pneg %p34
        %p209 = pneg %p58
        %p210 = pneg %p55
        %p211 = pneg %p79
        %p212 = pneg %p76
        %p213 = pneg %p105
        %p214 = pneg %p102
        %s215 = sand.u32 %s92, 1
        %s216 = sand.u32 %s92, 1
        %s217 = smul.addr %s216, 32
        %s218 = scalar_lea.vmem [#allocation3], %s217
        %p219 = pneg %p131
        %p220 = pneg %p128
        %s221 = smul.u32 2, %s16
        %p222 = scmp.lt.s32.totalorder %s221, 3
        %s223 = scalar_select %p222, %s221, 3
        %s224 = scalar_lea.vmem %s4, %s223
        %s225 = smul.u32 2, %s16
        %s226 = smul.u32 2, %s16
        %s227 = smul.u32 2, %s16
        %p228 = scmp.lt.s32.totalorder %s227, 3
        %s229 = scalar_select %p228, %s227, 3
        %s230 = scalar_lea.vmem %s4, %s229
        %s231 = smul.u32 2, %s16
        %v232 = vld [vmem:[%s199] sm:$0xff]
        %v233 = vld [vmem:[%s199 + $0x8] sm:$0xff]
        %v234 = vld [vmem:[%s199 + $0x10] sm:$0xff]
        %v235 = vld [vmem:[%s199 + $0x18] sm:$0xff]
        %v236 = vld [vmem:[%s1] sm:$0xff]
        %v237 = vld [vmem:[%s1 + $0x8] sm:$0xff]
        %v238 = vld [vmem:[%s1 + $0x10] sm:$0xff]
        %v239 = vld [vmem:[%s1 + $0x18] sm:$0xff]
        %v240 = vld [vmem:[%s1 + $0x20] sm:$0xff]
        %v241 = vld [vmem:[%s1 + $0x28] sm:$0xff]
        %v242 = vld [vmem:[%s1 + $0x30] sm:$0xff]
        %v243 = vld [vmem:[%s1 + $0x38] sm:$0xff]
        %v244 = vld [vmem:[%s1 + $0x40] sm:$0xff]
        %v245 = vld [vmem:[%s1 + $0x48] sm:$0xff]
        %v246 = vld [vmem:[%s1 + $0x50] sm:$0xff]
        %v247 = vld [vmem:[%s1 + $0x58] sm:$0xff]
        %v248 = vld [vmem:[%s1 + $0x60] sm:$0xff]
        %v249 = vld [vmem:[%s1 + $0x68] sm:$0xff]
        %v250 = vld [vmem:[%s1 + $0x70] sm:$0xff]
        %v251 = vld [vmem:[%s1 + $0x78] sm:$0xff]
        %v252 = vld [vmem:[%s2] sm:$0xff]
        %v253 = vld [vmem:[%s2 + $0x8] sm:$0xff]
        %v254 = vld [vmem:[%s2 + $0x10] sm:$0xff]
        %v255 = vld [vmem:[%s2 + $0x18] sm:$0xff]
        %v256 = vld [vmem:[%s2 + $0x20] sm:$0xff]
        %v257 = vld [vmem:[%s2 + $0x28] sm:$0xff]
        %v258 = vld [vmem:[%s2 + $0x30] sm:$0xff]
        %v259 = vld [vmem:[%s2 + $0x38] sm:$0xff]
        %v260 = vld [vmem:[%s2 + $0x40] sm:$0xff]
        %v261 = vld [vmem:[%s2 + $0x48] sm:$0xff]
        %v262 = vld [vmem:[%s2 + $0x50] sm:$0xff]
        %v263 = vld [vmem:[%s2 + $0x58] sm:$0xff]
        %v264 = vld [vmem:[%s2 + $0x60] sm:$0xff]
        %v265 = vld [vmem:[%s2 + $0x68] sm:$0xff]
        %v266 = vld [vmem:[%s2 + $0x70] sm:$0xff]
        %v267 = vld [vmem:[%s2 + $0x78] sm:$0xff]
        %vm268 = vcmask 130048
        %v270 = vsel %vm268, %v236, 0
        %v273 = vsel %vm268, %v237, 0
        %v276 = vsel %vm268, %v238, 0
        %v279 = vsel %vm268, %v239, 0
        %v282 = vsel %vm268, %v240, 0
        %v285 = vsel %vm268, %v241, 0
        %v288 = vsel %vm268, %v242, 0
        %v291 = vsel %vm268, %v243, 0
        %v294 = vsel %vm268, %v244, 0
        %v297 = vsel %vm268, %v245, 0
        %v300 = vsel %vm268, %v246, 0
        %v303 = vsel %vm268, %v247, 0
        %v306 = vsel %vm268, %v248, 0
        %v309 = vsel %vm268, %v249, 0
        %v312 = vsel %vm268, %v250, 0
        %v315 = vsel %vm268, %v251, 0
        %317 = vmatprep.subr.mxu0 %v233
        %318 = vmatpush1.msra.mxu0 %v232
        %319 = vmatprep.subr.mxu0 %v235
        %320 = vmatpush1.msra.mxu0 %v234
        %321 = vmatprep.subr.mxu0 0.0
        %322 = vmatpush1.msra.mxu0 0.0
        %323 = vmatprep.subr.mxu0 0.0
        %324 = vmatpush1.msra.mxu0 0.0
        %325 = vmatprep.subr.mxu0 0.0
        %326 = vmatpush1.msra.mxu0 0.0
        %327 = vmatprep.subr.mxu0 0.0
        %328 = vmatpush1.msra.mxu0 0.0
        %329 = vmatprep.subr.mxu0 0.0
        %330 = vmatpush1.msra.mxu0 0.0
        %331 = vmatprep.subr.mxu0 0.0
        %332 = vmatpush1.msra.mxu0 0.0
        %333 = vmatprep.subr.mxu0 0.0
        %334 = vmatpush1.msra.mxu0 0.0
        %335 = vmatprep.subr.mxu0 0.0
        %336 = vmatpush1.msra.mxu0 0.0
        %337 = vmatprep.subr.mxu0 0.0
        %338 = vmatpush1.msra.mxu0 0.0
        %339 = vmatprep.subr.mxu0 0.0
        %340 = vmatpush1.msra.mxu0 0.0
        %341 = vmatprep.subr.mxu0 0.0
        %342 = vmatpush1.msra.mxu0 0.0
        %343 = vmatprep.subr.mxu0 0.0
        %344 = vmatpush1.msra.mxu0 0.0
        %345 = vmatprep.subr.mxu0 0.0
        %346 = vmatpush1.msra.mxu0 0.0
        %347 = vmatprep.subr.mxu0 0.0
        %348 = vmatpush1.msra.mxu0 0.0
        %349 = vmatprep.subr.mxu0 0.0
        %350 = vmatpush1.msra.mxu0 0.0
        %351 = vmatprep.subr.mxu0 0.0
        %352 = vmatpush1.msra.mxu0 0.0
        %353 = vmatprep.subr.mxu0 0.0
        %354 = vmatpush1.msra.mxu0 0.0
        %355 = vmatprep.subr.mxu0 0.0
        %356 = vmatpush1.msra.mxu0 0.0
        %357 = vmatprep.subr.mxu0 0.0
        %358 = vmatpush1.msra.mxu0 0.0
        %359 = vmatprep.subr.mxu0 0.0
        %360 = vmatpush1.msra.mxu0 0.0
        %361 = vmatprep.subr.mxu0 0.0
        %362 = vmatpush1.msra.mxu0 0.0
        %363 = vmatprep.subr.mxu0 0.0
        %364 = vmatpush1.msra.mxu0 0.0
        %365 = vmatprep.subr.mxu0 0.0
        %366 = vmatpush1.msra.mxu0 0.0
        %367 = vmatprep.subr.mxu0 0.0
        %368 = vmatpush1.msra.mxu0 0.0
        %369 = vmatprep.subr.mxu0 0.0
        %370 = vmatpush1.msra.mxu0 0.0
        %371 = vmatprep.subr.mxu0 0.0
        %372 = vmatpush1.msra.mxu0 0.0
        %373 = vmatprep.subr.mxu0 0.0
        %374 = vmatpush1.msra.mxu0 0.0
        %375 = vmatprep.subr.mxu0 0.0
        %376 = vmatpush1.msra.mxu0 0.0
        %377 = vmatprep.subr.mxu0 0.0
        %378 = vmatpush1.msra.mxu0 0.0
        %379 = vmatprep.subr.mxu0 0.0
        %380 = vmatpush1.msra.mxu0 0.0
        %381 = vmatprep.mubr.f32.mxu0 0.0
        %382 = vmatmul.mubr.f32.gmra.mrb[0].mxu0 %v270
        %v383 = vpop.f32.mrb[0].mxu0
        %v384 = vadd.f32 0.0, %v383
        %v385 = vpop.f32.mrb[0].mxu0
        %v386 = vadd.f32 0.0, %v385
        %387 = vmatprep.mubr.f32.mxu0 0.0
        %388 = vmatmul.mubr.f32.gmra.mrb[0].mxu0 %v273
        %v389 = vpop.f32.mrb[0].mxu0
        %v390 = vadd.f32 0.0, %v389
        %v391 = vpop.f32.mrb[0].mxu0
        %v392 = vadd.f32 0.0, %v391
        %393 = vmatprep.mubr.f32.mxu0 0.0
        %394 = vmatmul.mubr.f32.gmra.mrb[0].mxu0 %v276
        %v395 = vpop.f32.mrb[0].mxu0
        %v396 = vadd.f32 0.0, %v395
        %v397 = vpop.f32.mrb[0].mxu0
        %v398 = vadd.f32 0.0, %v397
        %399 = vmatprep.mubr.f32.mxu0 0.0
        %400 = vmatmul.mubr.f32.gmra.mrb[0].mxu0 %v279
        %v401 = vpop.f32.mrb[0].mxu0
        %v402 = vadd.f32 0.0, %v401
        %v403 = vpop.f32.mrb[0].mxu0
        %v404 = vadd.f32 0.0, %v403
        %405 = vmatprep.mubr.f32.mxu0 0.0
        %406 = vmatmul.mubr.f32.gmra.mrb[0].mxu0 %v282
        %v407 = vpop.f32.mrb[0].mxu0
        %v408 = vadd.f32 0.0, %v407
        %v409 = vpop.f32.mrb[0].mxu0
        %v410 = vadd.f32 0.0, %v409
        %411 = vmatprep.mubr.f32.mxu0 0.0
        %412 = vmatmul.mubr.f32.gmra.mrb[0].mxu0 %v285
        %v413 = vpop.f32.mrb[0].mxu0
        %v414 = vadd.f32 0.0, %v413
        %v415 = vpop.f32.mrb[0].mxu0
        %v416 = vadd.f32 0.0, %v415
        %417 = vmatprep.mubr.f32.mxu0 0.0
        %418 = vmatmul.mubr.f32.gmra.mrb[0].mxu0 %v288
        %v419 = vpop.f32.mrb[0].mxu0
        %v420 = vadd.f32 0.0, %v419
        %v421 = vpop.f32.mrb[0].mxu0
        %v422 = vadd.f32 0.0, %v421
        %423 = vmatprep.mubr.f32.mxu0 0.0
        %424 = vmatmul.mubr.f32.gmra.mrb[0].mxu0 %v291
        %v425 = vpop.f32.mrb[0].mxu0
        %v426 = vadd.f32 0.0, %v425
        %v427 = vpop.f32.mrb[0].mxu0
        %v428 = vadd.f32 0.0, %v427
        %429 = vmatprep.mubr.f32.mxu0 0.0
        %430 = vmatmul.mubr.f32.gmra.mrb[0].mxu0 %v294
        %v431 = vpop.f32.mrb[0].mxu0
        %v432 = vadd.f32 0.0, %v431
        %v433 = vpop.f32.mrb[0].mxu0
        %v434 = vadd.f32 0.0, %v433
        %435 = vmatprep.mubr.f32.mxu0 0.0
        %436 = vmatmul.mubr.f32.gmra.mrb[0].mxu0 %v297
        %v437 = vpop.f32.mrb[0].mxu0
        %v438 = vadd.f32 0.0, %v437
        %v439 = vpop.f32.mrb[0].mxu0
        %v440 = vadd.f32 0.0, %v439
        %441 = vmatprep.mubr.f32.mxu0 0.0
        %442 = vmatmul.mubr.f32.gmra.mrb[0].mxu0 %v300
        %v443 = vpop.f32.mrb[0].mxu0
        %v444 = vadd.f32 0.0, %v443
        %v445 = vpop.f32.mrb[0].mxu0
        %v446 = vadd.f32 0.0, %v445
        %447 = vmatprep.mubr.f32.mxu0 0.0
        %448 = vmatmul.mubr.f32.gmra.mrb[0].mxu0 %v303
        %v449 = vpop.f32.mrb[0].mxu0
        %v450 = vadd.f32 0.0, %v449
        %v451 = vpop.f32.mrb[0].mxu0
        %v452 = vadd.f32 0.0, %v451
        %453 = vmatprep.mubr.f32.mxu0 0.0
        %454 = vmatmul.mubr.f32.gmra.mrb[0].mxu0 %v306
        %v455 = vpop.f32.mrb[0].mxu0
        %v456 = vadd.f32 0.0, %v455
        %v457 = vpop.f32.mrb[0].mxu0
        %v458 = vadd.f32 0.0, %v457
        %459 = vmatprep.mubr.f32.mxu0 0.0
        %460 = vmatmul.mubr.f32.gmra.mrb[0].mxu0 %v309
        %v461 = vpop.f32.mrb[0].mxu0
        %v462 = vadd.f32 0.0, %v461
        %v463 = vpop.f32.mrb[0].mxu0
        %v464 = vadd.f32 0.0, %v463
        %465 = vmatprep.mubr.f32.mxu0 0.0
        %466 = vmatmul.mubr.f32.gmra.mrb[0].mxu0 %v312
        %v467 = vpop.f32.mrb[0].mxu0
        %v468 = vadd.f32 0.0, %v467
        %v469 = vpop.f32.mrb[0].mxu0
        %v470 = vadd.f32 0.0, %v469
        %471 = vmatprep.mubr.f32.mxu0 0.0
        %472 = vmatmul.mubr.f32.gmra.mrb[0].mxu0 %v315
        %v473 = vpop.f32.mrb[0].mxu0
        %v474 = vadd.f32 0.0, %v473
        %v475 = vpop.f32.mrb[0].mxu0
        %v476 = vadd.f32 0.0, %v475
        %477 = vdwg.mxu0
        %v478 = vmul.f32 %v384, 2.0
        %v479 = vmul.f32 %v386, 2.0
        %v480 = vmul.f32 %v390, 2.0
        %v481 = vmul.f32 %v392, 2.0
        %v482 = vmul.f32 %v396, 2.0
        %v483 = vmul.f32 %v398, 2.0
        %v484 = vmul.f32 %v402, 2.0
        %v485 = vmul.f32 %v404, 2.0
        %v486 = vmul.f32 %v408, 2.0
        %v487 = vmul.f32 %v410, 2.0
        %v488 = vmul.f32 %v414, 2.0
        %v489 = vmul.f32 %v416, 2.0
        %v490 = vmul.f32 %v420, 2.0
        %v491 = vmul.f32 %v422, 2.0
        %v492 = vmul.f32 %v426, 2.0
        %v493 = vmul.f32 %v428, 2.0
        %v494 = vmul.f32 %v432, 2.0
        %v495 = vmul.f32 %v434, 2.0
        %v496 = vmul.f32 %v438, 2.0
        %v497 = vmul.f32 %v440, 2.0
        %v498 = vmul.f32 %v444, 2.0
        %v499 = vmul.f32 %v446, 2.0
        %v500 = vmul.f32 %v450, 2.0
        %v501 = vmul.f32 %v452, 2.0
        %v502 = vmul.f32 %v456, 2.0
        %v503 = vmul.f32 %v458, 2.0
        %v504 = vmul.f32 %v462, 2.0
        %v505 = vmul.f32 %v464, 2.0
        %v506 = vmul.f32 %v468, 2.0
        %v507 = vmul.f32 %v470, 2.0
        %v508 = vmul.f32 %v474, 2.0
        %v509 = vmul.f32 %v476, 2.0
        %511 = vset.pattern.permute.xlu0 0
        %512 = vperm.xlu0 %511, %v252
        %v513 = vpop.permute.xlu0 %512
        %516 = vset.pattern.permute.xlu0 0
        %517 = vperm.xlu0 %516, %v253
        %v518 = vpop.permute.xlu0 %517
        %521 = vset.pattern.permute.xlu0 0
        %522 = vperm.xlu0 %521, %v254
        %v523 = vpop.permute.xlu0 %522
        %526 = vset.pattern.permute.xlu0 0
        %527 = vperm.xlu0 %526, %v255
        %v528 = vpop.permute.xlu0 %527
        %531 = vset.pattern.permute.xlu0 0
        %532 = vperm.xlu0 %531, %v256
        %v533 = vpop.permute.xlu0 %532
        %536 = vset.pattern.permute.xlu0 0
        %537 = vperm.xlu0 %536, %v257
        %v538 = vpop.permute.xlu0 %537
        %541 = vset.pattern.permute.xlu0 0
        %542 = vperm.xlu0 %541, %v258
        %v543 = vpop.permute.xlu0 %542
        %546 = vset.pattern.permute.xlu0 0
        %547 = vperm.xlu0 %546, %v259
        %v548 = vpop.permute.xlu0 %547
        %551 = vset.pattern.permute.xlu0 0
        %552 = vperm.xlu0 %551, %v260
        %v553 = vpop.permute.xlu0 %552
        %556 = vset.pattern.permute.xlu0 0
        %557 = vperm.xlu0 %556, %v261
        %v558 = vpop.permute.xlu0 %557
        %561 = vset.pattern.permute.xlu0 0
        %562 = vperm.xlu0 %561, %v262
        %v563 = vpop.permute.xlu0 %562
        %566 = vset.pattern.permute.xlu0 0
        %567 = vperm.xlu0 %566, %v263
        %v568 = vpop.permute.xlu0 %567
        %571 = vset.pattern.permute.xlu0 0
        %572 = vperm.xlu0 %571, %v264
        %v573 = vpop.permute.xlu0 %572
        %576 = vset.pattern.permute.xlu0 0
        %577 = vperm.xlu0 %576, %v265
        %v578 = vpop.permute.xlu0 %577
        %581 = vset.pattern.permute.xlu0 0
        %582 = vperm.xlu0 %581, %v266
        %v583 = vpop.permute.xlu0 %582
        %586 = vset.pattern.permute.xlu0 0
        %587 = vperm.xlu0 %586, %v267
        %v588 = vpop.permute.xlu0 %587
        %v590 = vsub.f32 %v513, %v478
        %v591 = vsub.f32 %v513, %v479
        %v592 = vsub.f32 %v518, %v480
        %v593 = vsub.f32 %v518, %v481
        %v594 = vsub.f32 %v523, %v482
        %v595 = vsub.f32 %v523, %v483
        %v596 = vsub.f32 %v528, %v484
        %v597 = vsub.f32 %v528, %v485
        %v598 = vsub.f32 %v533, %v486
        %v599 = vsub.f32 %v533, %v487
        %v600 = vsub.f32 %v538, %v488
        %v601 = vsub.f32 %v538, %v489
        %v602 = vsub.f32 %v543, %v490
        %v603 = vsub.f32 %v543, %v491
        %v604 = vsub.f32 %v548, %v492
        %v605 = vsub.f32 %v548, %v493
        %v606 = vsub.f32 %v553, %v494
        %v607 = vsub.f32 %v553, %v495
        %v608 = vsub.f32 %v558, %v496
        %v609 = vsub.f32 %v558, %v497
        %v610 = vsub.f32 %v563, %v498
        %v611 = vsub.f32 %v563, %v499
        %v612 = vsub.f32 %v568, %v500
        %v613 = vsub.f32 %v568, %v501
        %v614 = vsub.f32 %v573, %v502
        %v615 = vsub.f32 %v573, %v503
        %v616 = vsub.f32 %v578, %v504
        %v617 = vsub.f32 %v578, %v505
        %v618 = vsub.f32 %v583, %v506
        %v619 = vsub.f32 %v583, %v507
        %v620 = vsub.f32 %v588, %v508
        %v621 = vsub.f32 %v588, %v509
        %v622 = vmin.f32 %v590, %v594
        %v623 = vmin.f32 %v592, %v596
        %v624 = vmin.f32 %v622, %v598
        %v625 = vmin.f32 %v623, %v600
        %v626 = vmin.f32 %v624, %v602
        %v627 = vmin.f32 %v625, %v604
        %v628 = vmin.f32 %v626, %v606
        %v629 = vmin.f32 %v627, %v608
        %v630 = vmin.f32 %v628, %v610
        %v631 = vmin.f32 %v629, %v612
        %v632 = vmin.f32 %v630, %v614
        %v633 = vmin.f32 %v631, %v616
        %v634 = vmin.f32 %v632, %v618
        %v635 = vmin.f32 %v633, %v620
        %v636 = vmin.f32 %v634, %v635
        %v637 = vrot.slane %v636, 4
        %v638 = vmin.f32 %v636, %v637
        %v639 = vrot.slane %v638, 2
        %v640 = vmin.f32 %v638, %v639
        %v641 = vrot.slane %v640, 1
        %v642 = vmin.f32 %v640, %v641
        %v643 = vmin.f32 %v591, %v595
        %v644 = vmin.f32 %v593, %v597
        %v645 = vmin.f32 %v643, %v599
        %v646 = vmin.f32 %v644, %v601
        %v647 = vmin.f32 %v645, %v603
        %v648 = vmin.f32 %v646, %v605
        %v649 = vmin.f32 %v647, %v607
        %v650 = vmin.f32 %v648, %v609
        %v651 = vmin.f32 %v649, %v611
        %v652 = vmin.f32 %v650, %v613
        %v653 = vmin.f32 %v651, %v615
        %v654 = vmin.f32 %v652, %v617
        %v655 = vmin.f32 %v653, %v619
        %v656 = vmin.f32 %v654, %v621
        %v657 = vmin.f32 %v655, %v656
        %v658 = vrot.slane %v657, 4
        %v659 = vmin.f32 %v657, %v658
        %v660 = vrot.slane %v659, 2
        %v661 = vmin.f32 %v659, %v660
        %v662 = vrot.slane %v661, 1
        %v663 = vmin.f32 %v661, %v662
        %v664 = vlaneseq
        %v665 = vshrl.u32 %v664, 7
        %v666 = vadd.s32 %v665, 8
        %v667 = vadd.s32 %v665, 16
        %v668 = vadd.s32 %v665, 24
        %v669 = vadd.s32 %v665, 32
        %v670 = vadd.s32 %v665, 40
        %v671 = vadd.s32 %v665, 48
        %v672 = vadd.s32 %v665, 56
        %v673 = vadd.s32 %v665, 64
        %v674 = vadd.s32 %v665, 72
        %v675 = vadd.s32 %v665, 80
        %v676 = vadd.s32 %v665, 88
        %v677 = vadd.s32 %v665, 96
        %v678 = vadd.s32 %v665, 104
        %v679 = vadd.s32 %v665, 112
        %v680 = vadd.s32 %v665, 120
        %vm681 = vcmp.eq.f32.partialorder %v590, %v642
        %vm682 = vcmp.eq.f32.partialorder %v591, %v663
        %vm683 = vcmp.eq.f32.partialorder %v592, %v642
        %vm684 = vcmp.eq.f32.partialorder %v593, %v663
        %vm685 = vcmp.eq.f32.partialorder %v594, %v642
        %vm686 = vcmp.eq.f32.partialorder %v595, %v663
        %vm687 = vcmp.eq.f32.partialorder %v596, %v642
        %vm688 = vcmp.eq.f32.partialorder %v597, %v663
        %vm689 = vcmp.eq.f32.partialorder %v598, %v642
        %vm690 = vcmp.eq.f32.partialorder %v599, %v663
        %vm691 = vcmp.eq.f32.partialorder %v600, %v642
        %vm692 = vcmp.eq.f32.partialorder %v601, %v663
        %vm693 = vcmp.eq.f32.partialorder %v602, %v642
        %vm694 = vcmp.eq.f32.partialorder %v603, %v663
        %vm695 = vcmp.eq.f32.partialorder %v604, %v642
        %vm696 = vcmp.eq.f32.partialorder %v605, %v663
        %vm697 = vcmp.eq.f32.partialorder %v606, %v642
        %vm698 = vcmp.eq.f32.partialorder %v607, %v663
        %vm699 = vcmp.eq.f32.partialorder %v608, %v642
        %vm700 = vcmp.eq.f32.partialorder %v609, %v663
        %vm701 = vcmp.eq.f32.partialorder %v610, %v642
        %vm702 = vcmp.eq.f32.partialorder %v611, %v663
        %vm703 = vcmp.eq.f32.partialorder %v612, %v642
        %vm704 = vcmp.eq.f32.partialorder %v613, %v663
        %vm705 = vcmp.eq.f32.partialorder %v614, %v642
        %vm706 = vcmp.eq.f32.partialorder %v615, %v663
        %vm707 = vcmp.eq.f32.partialorder %v616, %v642
        %vm708 = vcmp.eq.f32.partialorder %v617, %v663
        %vm709 = vcmp.eq.f32.partialorder %v618, %v642
        %vm710 = vcmp.eq.f32.partialorder %v619, %v663
        %vm711 = vcmp.eq.f32.partialorder %v620, %v642
        %vm712 = vcmp.eq.f32.partialorder %v621, %v663
        %v713 = vsel %vm681, %v665, 2147483647
        %v714 = vsel %vm682, %v665, 2147483647
        %v715 = vsel %vm683, %v666, 2147483647
        %v716 = vsel %vm684, %v666, 2147483647
        %v717 = vsel %vm685, %v667, 2147483647
        %v718 = vsel %vm686, %v667, 2147483647
        %v719 = vsel %vm687, %v668, 2147483647
        %v720 = vsel %vm688, %v668, 2147483647
        %v721 = vsel %vm689, %v669, 2147483647
        %v722 = vsel %vm690, %v669, 2147483647
        %v723 = vsel %vm691, %v670, 2147483647
        %v724 = vsel %vm692, %v670, 2147483647
        %v725 = vsel %vm693, %v671, 2147483647
        %v726 = vsel %vm694, %v671, 2147483647
        %v727 = vsel %vm695, %v672, 2147483647
        %v728 = vsel %vm696, %v672, 2147483647
        %v729 = vsel %vm697, %v673, 2147483647
        %v730 = vsel %vm698, %v673, 2147483647
        %v731 = vsel %vm699, %v674, 2147483647
        %v732 = vsel %vm700, %v674, 2147483647
        %v733 = vsel %vm701, %v675, 2147483647
        %v734 = vsel %vm702, %v675, 2147483647
        %v735 = vsel %vm703, %v676, 2147483647
        %v736 = vsel %vm704, %v676, 2147483647
        %v737 = vsel %vm705, %v677, 2147483647
        %v738 = vsel %vm706, %v677, 2147483647
        %v739 = vsel %vm707, %v678, 2147483647
        %v740 = vsel %vm708, %v678, 2147483647
        %v741 = vsel %vm709, %v679, 2147483647
        %v742 = vsel %vm710, %v679, 2147483647
        %v743 = vsel %vm711, %v680, 2147483647
        %v744 = vsel %vm712, %v680, 2147483647
        %vm745 = vcmp.lt.s32.totalorder %v713, %v717
        %v746 = vsel %vm745, %v713, %v717
        %vm747 = vcmp.lt.s32.totalorder %v715, %v719
        %v748 = vsel %vm747, %v715, %v719
        %vm749 = vcmp.lt.s32.totalorder %v746, %v721
        %v750 = vsel %vm749, %v746, %v721
        %vm751 = vcmp.lt.s32.totalorder %v748, %v723
        %v752 = vsel %vm751, %v748, %v723
        %vm753 = vcmp.lt.s32.totalorder %v750, %v725
        %v754 = vsel %vm753, %v750, %v725
        %vm755 = vcmp.lt.s32.totalorder %v752, %v727
        %v756 = vsel %vm755, %v752, %v727
        %vm757 = vcmp.lt.s32.totalorder %v754, %v729
        %v758 = vsel %vm757, %v754, %v729
        %vm759 = vcmp.lt.s32.totalorder %v756, %v731
        %v760 = vsel %vm759, %v756, %v731
        %vm761 = vcmp.lt.s32.totalorder %v758, %v733
        %v762 = vsel %vm761, %v758, %v733
        %vm763 = vcmp.lt.s32.totalorder %v760, %v735
        %v764 = vsel %vm763, %v760, %v735
        %vm765 = vcmp.lt.s32.totalorder %v762, %v737
        %v766 = vsel %vm765, %v762, %v737
        %vm767 = vcmp.lt.s32.totalorder %v764, %v739
        %v768 = vsel %vm767, %v764, %v739
        %vm769 = vcmp.lt.s32.totalorder %v766, %v741
        %v770 = vsel %vm769, %v766, %v741
        %vm771 = vcmp.lt.s32.totalorder %v768, %v743
        %v772 = vsel %vm771, %v768, %v743
        %vm773 = vcmp.lt.s32.totalorder %v770, %v772
        %v774 = vsel %vm773, %v770, %v772
        %v775 = vrot.slane %v774, 4
        %vm776 = vcmp.lt.s32.totalorder %v774, %v775
        %v777 = vsel %vm776, %v774, %v775
        %v778 = vrot.slane %v777, 2
        %vm779 = vcmp.lt.s32.totalorder %v777, %v778
        %v780 = vsel %vm779, %v777, %v778
        %v781 = vrot.slane %v780, 1
        %vm782 = vcmp.lt.s32.totalorder %v780, %v781
        %v783 = vsel %vm782, %v780, %v781
        %vm784 = vcmp.lt.s32.totalorder %v714, %v718
        %v785 = vsel %vm784, %v714, %v718
        %vm786 = vcmp.lt.s32.totalorder %v716, %v720
        %v787 = vsel %vm786, %v716, %v720
        %vm788 = vcmp.lt.s32.totalorder %v785, %v722
        %v789 = vsel %vm788, %v785, %v722
        %vm790 = vcmp.lt.s32.totalorder %v787, %v724
        %v791 = vsel %vm790, %v787, %v724
        %vm792 = vcmp.lt.s32.totalorder %v789, %v726
        %v793 = vsel %vm792, %v789, %v726
        %vm794 = vcmp.lt.s32.totalorder %v791, %v728
        %v795 = vsel %vm794, %v791, %v728
        %vm796 = vcmp.lt.s32.totalorder %v793, %v730
        %v797 = vsel %vm796, %v793, %v730
        %vm798 = vcmp.lt.s32.totalorder %v795, %v732
        %v799 = vsel %vm798, %v795, %v732
        %vm800 = vcmp.lt.s32.totalorder %v797, %v734
        %v801 = vsel %vm800, %v797, %v734
        %vm802 = vcmp.lt.s32.totalorder %v799, %v736
        %v803 = vsel %vm802, %v799, %v736
        %vm804 = vcmp.lt.s32.totalorder %v801, %v738
        %v805 = vsel %vm804, %v801, %v738
        %vm806 = vcmp.lt.s32.totalorder %v803, %v740
        %v807 = vsel %vm806, %v803, %v740
        %vm808 = vcmp.lt.s32.totalorder %v805, %v742
        %v809 = vsel %vm808, %v805, %v742
        %vm810 = vcmp.lt.s32.totalorder %v807, %v744
        %v811 = vsel %vm810, %v807, %v744
        %vm812 = vcmp.lt.s32.totalorder %v809, %v811
        %v813 = vsel %vm812, %v809, %v811
        %v814 = vrot.slane %v813, 4
        %vm815 = vcmp.lt.s32.totalorder %v813, %v814
        %v816 = vsel %vm815, %v813, %v814
        %v817 = vrot.slane %v816, 2
        %vm818 = vcmp.lt.s32.totalorder %v816, %v817
        %v819 = vsel %vm818, %v816, %v817
        %v820 = vrot.slane %v819, 1
        %vm821 = vcmp.lt.s32.totalorder %v819, %v820
        %v822 = vsel %vm821, %v819, %v820
        %vm823 = vcmp.eq.s32.totalorder %v665, %v783
        %vm824 = vcmp.eq.s32.totalorder %v665, %v822
        %vm825 = vcmp.eq.s32.totalorder %v666, %v783
        %vm826 = vcmp.eq.s32.totalorder %v666, %v822
        %vm827 = vcmp.eq.s32.totalorder %v667, %v783
        %vm828 = vcmp.eq.s32.totalorder %v667, %v822
        %vm829 = vcmp.eq.s32.totalorder %v668, %v783
        %vm830 = vcmp.eq.s32.totalorder %v668, %v822
        %vm831 = vcmp.eq.s32.totalorder %v669, %v783
        %vm832 = vcmp.eq.s32.totalorder %v669, %v822
        %vm833 = vcmp.eq.s32.totalorder %v670, %v783
        %vm834 = vcmp.eq.s32.totalorder %v670, %v822
        %vm835 = vcmp.eq.s32.totalorder %v671, %v783
        %vm836 = vcmp.eq.s32.totalorder %v671, %v822
        %vm837 = vcmp.eq.s32.totalorder %v672, %v783
        %vm838 = vcmp.eq.s32.totalorder %v672, %v822
        %vm839 = vcmp.eq.s32.totalorder %v673, %v783
        %vm840 = vcmp.eq.s32.totalorder %v673, %v822
        %vm841 = vcmp.eq.s32.totalorder %v674, %v783
        %vm842 = vcmp.eq.s32.totalorder %v674, %v822
        %vm843 = vcmp.eq.s32.totalorder %v675, %v783
        %vm844 = vcmp.eq.s32.totalorder %v675, %v822
        %vm845 = vcmp.eq.s32.totalorder %v676, %v783
        %vm846 = vcmp.eq.s32.totalorder %v676, %v822
        %vm847 = vcmp.eq.s32.totalorder %v677, %v783
        %vm848 = vcmp.eq.s32.totalorder %v677, %v822
        %vm849 = vcmp.eq.s32.totalorder %v678, %v783
        %vm850 = vcmp.eq.s32.totalorder %v678, %v822
        %vm851 = vcmp.eq.s32.totalorder %v679, %v783
        %vm852 = vcmp.eq.s32.totalorder %v679, %v822
        %vm853 = vcmp.eq.s32.totalorder %v680, %v783
        %vm854 = vcmp.eq.s32.totalorder %v680, %v822
        %v855 = vsel %vm823, 1, 0
        %v856 = vsel %vm824, 1, 0
        %v857 = vsel %vm825, 1, 0
        %v858 = vsel %vm826, 1, 0
        %v859 = vsel %vm827, 1, 0
        %v860 = vsel %vm828, 1, 0
        %v861 = vsel %vm829, 1, 0
        %v862 = vsel %vm830, 1, 0
        %v863 = vsel %vm831, 1, 0
        %v864 = vsel %vm832, 1, 0
        %v865 = vsel %vm833, 1, 0
        %v866 = vsel %vm834, 1, 0
        %v867 = vsel %vm835, 1, 0
        %v868 = vsel %vm836, 1, 0
        %v869 = vsel %vm837, 1, 0
        %v870 = vsel %vm838, 1, 0
        %v871 = vsel %vm839, 1, 0
        %v872 = vsel %vm840, 1, 0
        %v873 = vsel %vm841, 1, 0
        %v874 = vsel %vm842, 1, 0
        %v875 = vsel %vm843, 1, 0
        %v876 = vsel %vm844, 1, 0
        %v877 = vsel %vm845, 1, 0
        %v878 = vsel %vm846, 1, 0
        %v879 = vsel %vm847, 1, 0
        %v880 = vsel %vm848, 1, 0
        %v881 = vsel %vm849, 1, 0
        %v882 = vsel %vm850, 1, 0
        %v883 = vsel %vm851, 1, 0
        %v884 = vsel %vm852, 1, 0
        %v885 = vsel %vm853, 1, 0
        %v886 = vsel %vm854, 1, 0
        %v887 = vcvt.s32.f32 %v855
        %v888 = vcvt.s32.f32 %v856
        %v889 = vcvt.s32.f32 %v857
        %v890 = vcvt.s32.f32 %v858
        %v891 = vcvt.s32.f32 %v859
        %v892 = vcvt.s32.f32 %v860
        %v893 = vcvt.s32.f32 %v861
        %v894 = vcvt.s32.f32 %v862
        %v895 = vcvt.s32.f32 %v863
        %v896 = vcvt.s32.f32 %v864
        %v897 = vcvt.s32.f32 %v865
        %v898 = vcvt.s32.f32 %v866
        %v899 = vcvt.s32.f32 %v867
        %v900 = vcvt.s32.f32 %v868
        %v901 = vcvt.s32.f32 %v869
        %v902 = vcvt.s32.f32 %v870
        %v903 = vcvt.s32.f32 %v871
        %v904 = vcvt.s32.f32 %v872
        %v905 = vcvt.s32.f32 %v873
        %v906 = vcvt.s32.f32 %v874
        %v907 = vcvt.s32.f32 %v875
        %v908 = vcvt.s32.f32 %v876
        %v909 = vcvt.s32.f32 %v877
        %v910 = vcvt.s32.f32 %v878
        %v911 = vcvt.s32.f32 %v879
        %v912 = vcvt.s32.f32 %v880
        %v913 = vcvt.s32.f32 %v881
        %v914 = vcvt.s32.f32 %v882
        %v915 = vcvt.s32.f32 %v883
        %v916 = vcvt.s32.f32 %v884
        %v917 = vcvt.s32.f32 %v885
        %v918 = vcvt.s32.f32 %v886
        %919 = vxpose.xlu0.b32.start [1/16] %v236, 128
        %920 = vxpose.xlu0.b32.cont [2/16] %v237, 128
        %921 = vxpose.xlu0.b32.cont [3/16] %v238, 128
        %922 = vxpose.xlu0.b32.cont [4/16] %v239, 128
        %923 = vxpose.xlu0.b32.cont [5/16] %v240, 128
        %924 = vxpose.xlu0.b32.cont [6/16] %v241, 128
        %925 = vxpose.xlu0.b32.cont [7/16] %v242, 128
        %926 = vxpose.xlu0.b32.cont [8/16] %v243, 128
        %927 = vxpose.xlu0.b32.cont [9/16] %v244, 128
        %928 = vxpose.xlu0.b32.cont [10/16] %v245, 128
        %929 = vxpose.xlu0.b32.cont [11/16] %v246, 128
        %930 = vxpose.xlu0.b32.cont [12/16] %v247, 128
        %931 = vxpose.xlu0.b32.cont [13/16] %v248, 128
        %932 = vxpose.xlu0.b32.cont [14/16] %v249, 128
        %933 = vxpose.xlu0.b32.cont [15/16] %v250, 128
        %934 = vxpose.xlu0.b32.end [16/16] %v251, 128
        %v935 = vpop.trf.xlu0
        %v936 = vpop.trf.xlu0
        %v937 = vpop.trf.xlu0
        %v938 = vpop.trf.xlu0
        %v939 = vpop.trf.xlu0
        %v940 = vpop.trf.xlu0
        %v941 = vpop.trf.xlu0
        %v942 = vpop.trf.xlu0
        %v943 = vpop.trf.xlu0
        %v944 = vpop.trf.xlu0
        %v945 = vpop.trf.xlu0
        %v946 = vpop.trf.xlu0
        %v947 = vpop.trf.xlu0
        %v948 = vpop.trf.xlu0
        %v949 = vpop.trf.xlu0
        %v950 = vpop.trf.xlu0
        %951 = vmatprep.subr.mxu0 %v888
        %952 = vmatpush1.msra.mxu0 %v887
        %953 = vmatprep.subr.mxu0 %v890
        %954 = vmatpush1.msra.mxu0 %v889
        %955 = vmatprep.subr.mxu0 %v892
        %956 = vmatpush1.msra.mxu0 %v891
        %957 = vmatprep.subr.mxu0 %v894
        %958 = vmatpush1.msra.mxu0 %v893
        %959 = vmatprep.subr.mxu0 %v896
        %960 = vmatpush1.msra.mxu0 %v895
        %961 = vmatprep.subr.mxu0 %v898
        %962 = vmatpush1.msra.mxu0 %v897
        %963 = vmatprep.subr.mxu0 %v900
        %964 = vmatpush1.msra.mxu0 %v899
        %965 = vmatprep.subr.mxu0 %v902
        %966 = vmatpush1.msra.mxu0 %v901
        %967 = vmatprep.subr.mxu0 %v904
        %968 = vmatpush1.msra.mxu0 %v903
        %969 = vmatprep.subr.mxu0 %v906
        %970 = vmatpush1.msra.mxu0 %v905
        %971 = vmatprep.subr.mxu0 %v908
        %972 = vmatpush1.msra.mxu0 %v907
        %973 = vmatprep.subr.mxu0 %v910
        %974 = vmatpush1.msra.mxu0 %v909
        %975 = vmatprep.subr.mxu0 %v912
        %976 = vmatpush1.msra.mxu0 %v911
        %977 = vmatprep.subr.mxu0 %v914
        %978 = vmatpush1.msra.mxu0 %v913
        %979 = vmatprep.subr.mxu0 %v916
        %980 = vmatpush1.msra.mxu0 %v915
        %981 = vmatprep.subr.mxu0 %v918
        %982 = vmatpush1.msra.mxu0 %v917
        %983 = vmatprep.subr.mxu0 0.0
        %984 = vmatpush1.msra.mxu0 0.0
        %985 = vmatprep.subr.mxu0 0.0
        %986 = vmatpush1.msra.mxu0 0.0
        %987 = vmatprep.subr.mxu0 0.0
        %988 = vmatpush1.msra.mxu0 0.0
        %989 = vmatprep.subr.mxu0 0.0
        %990 = vmatpush1.msra.mxu0 0.0
        %991 = vmatprep.subr.mxu0 0.0
        %992 = vmatpush1.msra.mxu0 0.0
        %993 = vmatprep.subr.mxu0 0.0
        %994 = vmatpush1.msra.mxu0 0.0
        %995 = vmatprep.subr.mxu0 0.0
        %996 = vmatpush1.msra.mxu0 0.0
        %997 = vmatprep.subr.mxu0 0.0
        %998 = vmatpush1.msra.mxu0 0.0
        %999 = vmatprep.subr.mxu0 0.0
        %1000 = vmatpush1.msra.mxu0 0.0
        %1001 = vmatprep.subr.mxu0 0.0
        %1002 = vmatpush1.msra.mxu0 0.0
        %1003 = vmatprep.subr.mxu0 0.0
        %1004 = vmatpush1.msra.mxu0 0.0
        %1005 = vmatprep.subr.mxu0 0.0
        %1006 = vmatpush1.msra.mxu0 0.0
        %1007 = vmatprep.subr.mxu0 0.0
        %1008 = vmatpush1.msra.mxu0 0.0
        %1009 = vmatprep.subr.mxu0 0.0
        %1010 = vmatpush1.msra.mxu0 0.0
        %1011 = vmatprep.subr.mxu0 0.0
        %1012 = vmatpush1.msra.mxu0 0.0
        %1013 = vmatprep.subr.mxu0 0.0
        %1014 = vmatpush1.msra.mxu0 0.0
        %1015 = vmatprep.mubr.f32.mxu0 0.0
        %1016 = vmatmul.mubr.f32.gmra.mrb[0].mxu0 %v935
        %v1017 = vpop.f32.mrb[0].mxu0
        %v1018 = vadd.f32 0.0, %v1017
        %v1019 = vpop.f32.mrb[0].mxu0
        %v1020 = vadd.f32 0.0, %v1019
        %1021 = vmatprep.mubr.f32.mxu0 0.0
        %1022 = vmatmul.mubr.f32.gmra.mrb[0].mxu0 %v936
        %v1023 = vpop.f32.mrb[0].mxu0
        %v1024 = vadd.f32 0.0, %v1023
        %v1025 = vpop.f32.mrb[0].mxu0
        %v1026 = vadd.f32 0.0, %v1025
        %1027 = vdwg.mxu0
        %1028 = vst [vmem:[%s218] sm:$0xff] %v1018
        %1029 = vst [vmem:[%s218 + $0x8] sm:$0xff] %v1020
        %1030 = vst [vmem:[%s218 + $0x10] sm:$0xff] %v1024
        %1031 = vst [vmem:[%s218 + $0x18] sm:$0xff] %v1026
        %v1032 = vcombine.low %v783, %v822
        %v1034 = vunpack.c.l.s4 1966171168
        %v1035 = vunpack.c.0.s8 %v1034
        %v1036 = vlaneseq
        %v1037 = vshrl.u32 %v1036, 7
        %v1038 = vsub.s32 %v1035, %v1037
        %v1039 = vrot.slane %v1032, %v1038
        %v1041 = vunpack.c.l.s4 1966171168
        %v1042 = vunpack.c.0.s8 %v1041
        %v1043 = vlaneseq
        %v1044 = vshrl.u32 %v1043, 7
        %v1045 = vsub.s32 %v1042, %v1044
        %v1046 = vrot.slane %v1039, %v1045
        %v1047 = vlaneseq
        %vm1048 = vcmp.ge.s32.totalorder %v1047, 0
        %vm1049 = vcmp.lt.s32.totalorder %v1047, 256
        %vm1050 = vmand %vm1048, %vm1049
        %1051 = vst.msk [vmem:[%s230] sm:$0x3] %vm1050, %v1046
        %s1052 = sand.u32 %s92, 1
        %s1053 = sand.u32 %s92, 1
        %s1054 = smul.addr %s1053, 32
        %s1055 = scalar_lea.vmem [#allocation3], %s1054
        %s1056 = smul.u32 2, %s16
        %p1057 = scmp.lt.s32.totalorder %s1056, 3
        %s1058 = scalar_select %p1057, %s1056, 3
        %s1059 = scalar_lea.vmem %s4, %s1058
        // Predicated region
        $region56: #{vector_quantizer_forward.1} parent=50 // pred_check
          %p1060 = pneg %p102
        $region57: #{vector_quantizer_forward.1} parent=50 // pred_check_branch
          %1062 = sbr.rel (%p1060) target = $region59
        $region58: #{vector_quantizer_forward.1} parent=50 // pred_region
          %s1063 = smul.u32 2, %s16
          %s1064 = smul.addr %s1063, 8
          %s1065 = scalar_lea.vmem %s3, %s1064
          // Predicated region
          $region60: #{vector_quantizer_forward.1} parent=58 // pred_check
            _
          $region61: #{vector_quantizer_forward.1} parent=58 // pred_check_branch
            %1067 = sbr.rel (0) target = $region63
          $region62: #{vector_quantizer_forward.1} parent=58 // pred_region
            // Predicated region
            $region64: #{vector_quantizer_forward.1} parent=62 // pred_check
              _
            $region65: #{vector_quantizer_forward.1} parent=62 // pred_check_branch
              %1069 = sbr.rel (0) target = $region67
            $region66: #{vector_quantizer_forward.1} parent=62 // pred_region
              loop: start=0, step=1, limit=1
              $region68: #{vector_quantizer_forward.1} parent=66 // loop_pre_header
                _
              $region69: #{vector_quantizer_forward.1} parent=66 // loop_header
                %s1071 = sphi 0, %s1075
                %p1072 = scmp.ge.s32.totalorder %s1071, 1
                %s1076 = sphi %s1055, %s1055
                %s1077 = sphi %s1065, %s1065
              $region70: #{vector_quantizer_forward.1} parent=66 // loop_header_branch
                %1074 = sbr.rel (%p1072) target = $region74
              $region71: #{vector_quantizer_forward.1} parent=66 // loop_body
                %v1078 = vld [vmem:[%s1076] sm:$0xff]
                %1079 = vst [vmem:[%s1077] sm:$0xff] %v1078
                %v1080 = vld [vmem:[%s1076 + $0x8] sm:$0xff]
                %1081 = vst [vmem:[%s1077 + $0x8] sm:$0xff] %v1080
                %v1082 = vld [vmem:[%s1076 + $0x10] sm:$0xff]
                %1083 = vst [vmem:[%s1077 + $0x20] sm:$0xff] %v1082
                %v1084 = vld [vmem:[%s1076 + $0x18] sm:$0xff]
                %1085 = vst [vmem:[%s1077 + $0x28] sm:$0xff] %v1084
              $region72: #{vector_quantizer_forward.1} parent=66 // loop_footer
                %s1075 = sadd.s32 1, %s1071
              $region73: #{vector_quantizer_forward.1} parent=66 // loop_footer_branch
                %1070 = sbr.rel target = $region69
              $region74: #{vector_quantizer_forward.1} parent=66 // loop_exit
                _
            $region67: #{vector_quantizer_forward.1} parent=62 // pred_fallthru
              _
            // Predicated region
            $region75: #{vector_quantizer_forward.1} parent=62 // pred_check
              _
            $region76: #{vector_quantizer_forward.1} parent=62 // pred_check_branch
              %1087 = sbr.rel target = $region78
            $region77: #{vector_quantizer_forward.1} parent=62 // pred_region
              _
            $region78: #{vector_quantizer_forward.1} parent=62 // pred_fallthru
              _
          $region63: #{vector_quantizer_forward.1} parent=58 // pred_fallthru
            _
          %1088 = vnop
        $region59: #{vector_quantizer_forward.1} parent=50 // pred_fallthru
          _
        // Predicated region
        $region79: #{vector_quantizer_forward.1} parent=50 // pred_check
          %p1089 = pneg %p128
        $region80: #{vector_quantizer_forward.1} parent=50 // pred_check_branch
          %1091 = sbr.rel (%p1089) target = $region82
        $region81: #{vector_quantizer_forward.1} parent=50 // pred_region
          %s1092 = smul.u32 2, %s16
        $region82: #{vector_quantizer_forward.1} parent=50 // pred_fallthru
          _
      $region51: #{vector_quantizer_forward.1} parent=5 // pred_fallthru
        _
      %p1093 = scmp.le.s32.totalorder 2, %s11
      // Predicated region
      $region83: #{vector_quantizer_forward.1} parent=5 // pred_check
        %p1094 = pneg %p1093
      $region84: #{vector_quantizer_forward.1} parent=5 // pred_check_branch
        %1096 = sbr.rel (%p1094) target = $region86
      $region85: #{vector_quantizer_forward.1} parent=5 // pred_region
        %s1097 = ssub.s32 %s11, 2
        // Predicated region
        $region87: #{vector_quantizer_forward.1} parent=85 // pred_check
          %p1098 = pneg %p108
        $region88: #{vector_quantizer_forward.1} parent=85 // pred_check_branch
          %1100 = sbr.rel (%p1098) target = $region90
        $region89: #{vector_quantizer_forward.1} parent=85 // pred_region
          %s1101 = sand.u32 %s93, 1
          %s1102 = sand.u32 %s93, 1
          %s1103 = smul.addr %s1102, 32
          %s1104 = scalar_lea.vmem [#allocation3], %s1103
        $region90: #{vector_quantizer_forward.1} parent=85 // pred_fallthru
          _
        // Predicated region
        $region91: #{vector_quantizer_forward.1} parent=85 // pred_check
          %p1105 = pneg %p134
        $region92: #{vector_quantizer_forward.1} parent=85 // pred_check_branch
          %1107 = sbr.rel (%p1105) target = $region94
        $region93: #{vector_quantizer_forward.1} parent=85 // pred_region
          %s1108 = smul.u32 2, %s17
          %p1109 = scmp.lt.s32.totalorder %s1108, 3
          %s1110 = scalar_select %p1109, %s1108, 3
          %s1111 = scalar_lea.vmem %s4, %s1110
        $region94: #{vector_quantizer_forward.1} parent=85 // pred_fallthru
          _
      $region86: #{vector_quantizer_forward.1} parent=5 // pred_fallthru
        _
    $region6: #{vector_quantizer_forward.1} parent=1 // loop_footer
      %s15 = sadd.s32 1, %s11
    $region7: #{vector_quantizer_forward.1} parent=1 // loop_footer_branch
      %10 = sbr.rel target = $region3
    $region8: #{vector_quantizer_forward.1} parent=1 // loop_exit
      _

</llo_original>
